<compile_context>
chip_gen: v5e
topology: v5e:2x2
jax: 0.10.0
libtpu: 0.0.40
codegen_flags: <defaults>
</compile_context>

<pallas_src>
import math
from functools import partial

import numpy as np
import jax
import jax.numpy as jnp
from jax.experimental import pallas as pl
from jax.experimental.pallas import tpu as pltpu


def calc_padding(x_shape, patchsize, stride):
    xdim = x_shape
    padvert = -(xdim[0] - patchsize) % stride
    padhorz = -(xdim[1] - patchsize) % stride
    padtop = int(np.floor(padvert / 2.0))
    padbottom = int(np.ceil(padvert / 2.0))
    padleft = int(np.floor(padhorz / 2.0))
    padright = int(np.ceil(padhorz / 2.0))
    return (padtop, padbottom, padleft, padright)


def _round_up(x, m):
    return ((x + m - 1) // m) * m


def _choose_tm(m, k_pad, e_pad, out_itemsize=4,
               vmem_budget=12 * 1024 * 1024, tm_cap=1024):
    """Pick the M-tile.

    Preferences: multiple of 16 (bf16 sublane packing), divides M exactly
    (no padded rows / no post-kernel slice copy), leaves >= 2 grid steps
    (v7x has 2 TensorCores), and the per-step working set
    (2x patches + resident weight + 2x output + bias/gamma/beta) stays under
    ~12 MiB so double-buffering survives even v5e's 16 MiB default scoped VMEM.
    """
    in_itemsize = 2  # bf16 patches / weight
    fixed = 2 * k_pad * e_pad * in_itemsize + 6 * e_pad * 4
    per_row = 2 * (k_pad * in_itemsize + e_pad * out_itemsize)
    cap = (vmem_budget - fixed) // per_row
    cap = int(max(16, min(cap, tm_cap)))
    cap = (cap // 16) * 16

    divisors = [t for t in range(16, min(cap, m) + 1, 16) if m % t == 0]
    if divisors:
        multi_step = [t for t in divisors if m // t >= 2]
        tm = max(multi_step) if multi_step else max(divisors)
        return tm, m
    # Fallback: M has no suitable divisor -> pad M up to a tm multiple.
    tm = min(cap, _round_up(m, 16))
    return tm, _round_up(m, tm)


# ----------------------------- Pallas kernels --------------------------------

def _proj_kernel(p_ref, w_ref, b_ref, o_ref):
    # P: (TM, K_pad)  W: (K_pad, E_pad)  b: (1, E_pad)  O: (TM, E_pad)
    acc = jnp.dot(p_ref[...], w_ref[...], preferred_element_type=jnp.float32)
    o_ref[...] = (acc + b_ref[...]).astype(o_ref.dtype)


def _proj_ln_kernel(p_ref, w_ref, b_ref, g_ref, bb_ref, o_ref, *, e_true):
    # Projection + fused LayerNorm over the true E lanes (padded lanes masked).
    acc = jnp.dot(p_ref[...], w_ref[...], preferred_element_type=jnp.float32)
    acc = acc + b_ref[...]
    lane = jax.lax.broadcasted_iota(jnp.int32, acc.shape, 1)
    mask = lane < e_true
    inv_e = jnp.float32(1.0 / e_true)
    # Padded columns of acc are exactly 0 (zero-padded W and bias), but we
    # still mask so mean/variance only see the true E features.
    mu = jnp.sum(jnp.where(mask, acc, 0.0), axis=-1, keepdims=True) * inv_e
    d = jnp.where(mask, acc - mu, 0.0)
    var = jnp.sum(d * d, axis=-1, keepdims=True) * inv_e
    y = d * jax.lax.rsqrt(var + jnp.float32(1e-5))
    o_ref[...] = (y * g_ref[...] + bb_ref[...]).astype(o_ref.dtype)


def _patch_proj(patches, w_flat, bias2d, *, tm, out_dtype=jnp.float32,
                ln_params=None):
    """patches: (M_pad, K_pad) bf16, w_flat: (K_pad, E_pad) bf16,
    bias2d: (1, E_pad) f32 -> (M_pad, E_pad) out_dtype.

    1-D grid over M; E untiled (weight & bias resident in VMEM).
    Requires M_pad % tm == 0.
    """
    m_pad, k_pad = patches.shape
    e_pad = w_flat.shape[1]
    grid = (m_pad // tm,)

    out_isz = jnp.dtype(out_dtype).itemsize
    cost = pl.CostEstimate(
        flops=2 * m_pad * k_pad * e_pad,
        bytes_accessed=(m_pad * k_pad * patches.dtype.itemsize      # patches once
                        + k_pad * e_pad * w_flat.dtype.itemsize     # weight once
                        + m_pad * e_pad * out_isz                   # output once
                        + 3 * e_pad * 4),                           # bias/gamma/beta
        transcendentals=0,
    )

    p_spec = pl.BlockSpec((tm, k_pad), lambda i: (i, 0))
    w_spec = pl.BlockSpec((k_pad, e_pad), lambda i: (0, 0))   # constant -> resident
    v_spec = pl.BlockSpec((1, e_pad), lambda i: (0, 0))       # bias/gamma/beta resident
    o_spec = pl.BlockSpec((tm, e_pad), lambda i: (i, 0))

    if ln_params is None:
        kernel = _proj_kernel
        in_specs = [p_spec, w_spec, v_spec]
        operands = (patches, w_flat, bias2d)
    else:
        gamma2d, beta2d, e_true = ln_params
        kernel = partial(_proj_ln_kernel, e_true=e_true)
        in_specs = [p_spec, w_spec, v_spec, v_spec, v_spec]
        operands = (patches, w_flat, bias2d, gamma2d, beta2d)

    return pl.pallas_call(
        kernel,
        out_shape=jax.ShapeDtypeStruct((m_pad, e_pad), out_dtype),
        grid=grid,
        in_specs=in_specs,
        out_specs=o_spec,
        compiler_params=pltpu.CompilerParams(
            dimension_semantics=("parallel",)),
        cost_estimate=cost,
    )(*operands)


# ----------------------------- PatchEmbed module ----------------------------

class PatchEmbed:
    """Image to Patch Embedding (Pallas/TPU version of the torch module)."""

    def __init__(self, img_size=224, patch_size=16, patch_count=14,
                 patch_stride=16, in_chans=3, embed_dim=768, with_norm=False,
                 *, key=None, dtype=jnp.float32, mxu_dtype=jnp.bfloat16,
                 out_dtype=jnp.float32):
        self.patch_size = (patch_size, patch_size)
        self.patch_stride = patch_stride
        self.in_chans = in_chans
        self.embed_dim = embed_dim
        self.with_norm = with_norm
        self.mxu_dtype = jnp.dtype(mxu_dtype)
        self.out_dtype = jnp.dtype(out_dtype)

        if key is None:
            key = jax.random.PRNGKey(0)
        kw, kb = jax.random.split(key)
        ph, pw = self.patch_size
        K = in_chans * ph * pw
        bound = 1.0 / math.sqrt(K)
        # Deterministic init mimicking torch Conv2d default (uniform +-bound).
        self.proj_weight = jax.random.uniform(
            kw, (embed_dim, in_chans, ph, pw), dtype, -bound, bound)
        self.proj_bias = jax.random.uniform(kb, (embed_dim,), dtype, -bound, bound)

        # Lane-friendly padded sizes (multiples of 128).
        self.k = K
        self.k_pad = _round_up(max(K, 128), 128)
        self.e_pad = _round_up(max(embed_dim, 128), 128)

        # Precompute flattened / transposed / padded / bf16 weight once.
        w_flat = self.proj_weight.reshape(embed_dim, K).T                 # (K, E)
        w_flat = jnp.pad(
            w_flat, ((0, self.k_pad - K), (0, self.e_pad - embed_dim)))   # (K_pad, E_pad)
        self._w_flat = w_flat.astype(self.mxu_dtype)
        self._bias2d = jnp.pad(
            self.proj_bias.astype(jnp.float32),
            (0, self.e_pad - embed_dim)).reshape(1, self.e_pad)

        if with_norm:
            # LayerNorm(E) params (torch default init: ones / zeros).
            self.norm_weight = jnp.ones((embed_dim,), jnp.float32)
            self.norm_bias = jnp.zeros((embed_dim,), jnp.float32)
            self._gamma2d = jnp.pad(
                self.norm_weight, (0, self.e_pad - embed_dim)).reshape(1, self.e_pad)
            self._beta2d = jnp.pad(
                self.norm_bias, (0, self.e_pad - embed_dim)).reshape(1, self.e_pad)

    def _extract_patches(self, xp, n):
        """xp: padded (B, C, Hp, Wp) -> (B*n*n, C*ph*pw), rows flattened (C, ph, pw)."""
        B, C, Hp, Wp = xp.shape
        ph, pw = self.patch_size
        stride = self.patch_stride
        if stride == ph and stride == pw and Hp == n * ph and Wp == n * pw:
            # Non-overlapping patches: single fused reshape/transpose (in bf16).
            p = xp.reshape(B, C, n, ph, n, pw)
            p = p.transpose(0, 2, 4, 1, 3, 5)              # (B, nH, nW, C, ph, pw)
            return p.reshape(B * n * n, C * ph * pw)
        # Overlapping / strided case: fused patch extraction; feature order is
        # channel-major (C, ph, pw), matching proj_weight.reshape(E, C*ph*pw).
        feat = jax.lax.conv_general_dilated_patches(
            xp, (ph, pw), (stride, stride), 'VALID',
            dimension_numbers=('NCHW', 'OIHW', 'NCHW'))    # (B, C*ph*pw, n, n)
        return feat.transpose(0, 2, 3, 1).reshape(B * n * n, C * ph * pw)

    def __call__(self, x):
        # x: (B, C, H, W) NCHW
        B, C, H, W = x.shape
        ph, pw = self.patch_size
        stride = self.patch_stride
        padtop, padbottom, padleft, padright = calc_padding((H, W), ph, stride)
        assert H == W, 'only support H == W image'
        n = math.floor((H + padtop + padbottom - (ph - 1) - 1) / stride + 1)
        # Parity with the torch module; do not rely on this under jit retraces.
        self.patch_count = n

        # Cast to the MXU dtype BEFORE the im2col transpose so the dominant
        # HBM traffic (full read+write of the M*K patches) moves bf16.
        xq = x.astype(self.mxu_dtype)
        xp = jnp.pad(xq, ((0, 0), (0, 0), (padtop, padbottom), (padleft, padright)))
        patches = self._extract_patches(xp, n)             # (M, K) bf16

        M = B * n * n
        K = C * ph * pw
        assert K == self.k, "input channels / patch size mismatch vs. init"

        tm, m_pad = _choose_tm(M, self.k_pad, self.e_pad,
                               out_itemsize=self.out_dtype.itemsize)
        patches = jnp.pad(patches, ((0, m_pad - M), (0, self.k_pad - K)))

        ln_params = None
        if self.with_norm:
            ln_params = (self._gamma2d, self._beta2d, self.embed_dim)

        out = _patch_proj(patches, self._w_flat, self._bias2d, tm=tm,
                          out_dtype=self.out_dtype, ln_params=ln_params)
        # No-op slices when m_pad == M and e_pad == embed_dim.
        out = out[:M, :self.embed_dim].reshape(B, n * n, self.embed_dim)
        return out


# ----------------------------- reference & main ------------------------------

def _reference(x, weight, bias, patch_size, stride, mxu_dtype=jnp.bfloat16):
    """Pure-JAX reference: pad + conv (NCHW) + flatten + transpose.

    Inputs are rounded to the MXU dtype (matching the kernel's bf16 feed with
    f32 accumulation), so the comparison is tight.
    """
    B, C, H, W = x.shape
    ph = patch_size
    padtop, padbottom, padleft, padright = calc_padding((H, W), ph, stride)
    xp = jnp.pad(x, ((0, 0), (0, 0), (padtop, padbottom), (padleft, padright)))
    xq = xp.astype(mxu_dtype).astype(jnp.float32)
    wq = weight.astype(mxu_dtype).astype(jnp.float32)
    y = jax.lax.conv_general_dilated(
        xq, wq, window_strides=(stride, stride), padding='VALID',
        dimension_numbers=('NCHW', 'OIHW', 'NCHW'),
        precision=jax.lax.Precision.HIGHEST)
    y = y + bias.reshape(1, -1, 1, 1).astype(jnp.float32)
    B_, E, Hp, Wp = y.shape
    return y.reshape(B_, E, Hp * Wp).transpose(0, 2, 1)


def _reference_layernorm(y, gamma, beta, eps=1e-5):
    mu = y.mean(axis=-1, keepdims=True)
    var = jnp.mean((y - mu) ** 2, axis=-1, keepdims=True)
    return (y - mu) * jax.lax.rsqrt(var + eps) * gamma + beta


if __name__ == "__main__":
    key = jax.random.PRNGKey(0)
    kx, kp = jax.random.split(key)

    # Small shapes consistent with the module: B=2, C=4, 16x16 image,
    # patch_size=4, stride=4, embed_dim=32 -> N = 16 patches.
    B, C, H, W = 2, 4, 16, 16
    patch_size, stride, embed_dim = 4, 4, 32

    x = jax.random.normal(kx, (B, C, H, W), jnp.float32)

    # --- no norm ---
    pe = PatchEmbed(img_size=H, patch_size=patch_size, patch_count=H // stride,
                    patch_stride=stride, in_chans=C, embed_dim=embed_dim,
                    with_norm=False, key=kp)
    out = jax.block_until_ready(pe(x))
    ref = _reference(x, pe.proj_weight, pe.proj_bias, patch_size, stride)
    np.testing.assert_allclose(np.asarray(out), np.asarray(ref),
                               rtol=2e-3, atol=2e-3)
    assert out.shape == (B, (H // stride) ** 2, embed_dim)

    # --- fused LayerNorm ---
    pe_n = PatchEmbed(img_size=H, patch_size=patch_size, patch_count=H // stride,
                      patch_stride=stride, in_chans=C, embed_dim=embed_dim,
                      with_norm=True, key=kp)
    out_n = jax.block_until_ready(pe_n(x))
    ref_n = _reference_layernorm(ref, pe_n.norm_weight, pe_n.norm_bias)
    np.testing.assert_allclose(np.asarray(out_n), np.asarray(ref_n),
                               rtol=2e-3, atol=2e-3)
    assert out_n.shape == (B, (H // stride) ** 2, embed_dim)

    print("KERNEL_OK")
</pallas_src>

<mosaic_0001>
module attributes {stable_mosaic.version = 11 : i64} {
  func.func @_proj_kernel(%arg0: i32, %arg1: memref<16x128xbf16, #tpu.memory_space<vmem>>, %arg2: memref<128x128xbf16, #tpu.memory_space<vmem>>, %arg3: memref<1x128xf32, #tpu.memory_space<vmem>>, %arg4: memref<16x128xf32, #tpu.memory_space<vmem>>) attributes {dimension_semantics = [#tpu.dimension_semantics<parallel>], iteration_bounds = array<i64: 2>, scalar_prefetch = 0 : i64, scratch_operands = 0 : i64, tpu.core_type = #tpu.core_type<tc>, window_params = [{transform_indices = @transform_0, window_bounds = array<i64: 16, 128>}, {pipeline_mode = #tpu.pipeline_mode<synchronous>, transform_indices = @transform_1, window_bounds = array<i64: 128, 128>}, {pipeline_mode = #tpu.pipeline_mode<synchronous>, transform_indices = @transform_2, window_bounds = array<i64: 1, 128>}, {transform_indices = @transform_3, window_bounds = array<i64: 16, 128>}]} {
    %c0 = arith.constant 0 : index
    %c0_0 = arith.constant 0 : index
    %0 = vector.load %arg1[%c0, %c0_0] : memref<16x128xbf16, #tpu.memory_space<vmem>>, vector<16x128xbf16>
    %c0_1 = arith.constant 0 : index
    %c0_2 = arith.constant 0 : index
    %1 = vector.load %arg2[%c0_1, %c0_2] : memref<128x128xbf16, #tpu.memory_space<vmem>>, vector<128x128xbf16>
    %cst = arith.constant dense<0.000000e+00> : vector<16x128xf32>
    %2 = tpu.matmul %0, %1, %cst {dimension_numbers = #tpu.dot_dimension_numbers<[1], [0], [0], [1], [0, 0, 1, 1], [], []>} : vector<16x128xbf16>, vector<128x128xbf16>, vector<16x128xf32> -> vector<16x128xf32>
    %c0_3 = arith.constant 0 : index
    %c0_4 = arith.constant 0 : index
    %3 = vector.load %arg3[%c0_3, %c0_4] : memref<1x128xf32, #tpu.memory_space<vmem>>, vector<1x128xf32>
    %4 = vector.broadcast %3 : vector<1x128xf32> to vector<16x128xf32>
    %5 = arith.addf %2, %4 : vector<16x128xf32>
    %c0_5 = arith.constant 0 : index
    %c0_6 = arith.constant 0 : index
    %6 = vector.load %arg4[%c0_5, %c0_6] : memref<16x128xf32, #tpu.memory_space<vmem>>, vector<16x128xf32>
    tpu.vector_store %arg4[%c0_5, %c0_6], %5 {strides = array<i32>} : memref<16x128xf32, #tpu.memory_space<vmem>>, vector<16x128xf32>,
    return
  }
  func.func @transform_0(%arg0: i32) -> (i32, i32) {
    %c0_i32 = arith.constant 0 : i32
    %c0_i32_0 = arith.constant 0 : i32
    return %arg0, %c0_i32 : i32, i32
  }
  func.func @transform_1(%arg0: i32) -> (i32, i32) {
    %c0_i32 = arith.constant 0 : i32
    %c0_i32_0 = arith.constant 0 : i32
    %c0_i32_1 = arith.constant 0 : i32
    return %c0_i32, %c0_i32_0 : i32, i32
  }
  func.func @transform_2(%arg0: i32) -> (i32, i32) {
    %c0_i32 = arith.constant 0 : i32
    %c0_i32_0 = arith.constant 0 : i32
    %c0_i32_1 = arith.constant 0 : i32
    return %c0_i32, %c0_i32_0 : i32, i32
  }
  func.func @transform_3(%arg0: i32) -> (i32, i32) {
    %c0_i32 = arith.constant 0 : i32
    %c0_i32_0 = arith.constant 0 : i32
    return %arg0, %c0_i32 : i32, i32
  }
}

</mosaic_0001>

<llo_original>
// kernel: tpu_custom_call.1
$region0: #{tpu_custom_call.1}
  #allocation0 [shape = 'u32[]', space=smem, size = 0x4, offset = 0x4, fixed_abs, tag = 'smem constant byte address 0x4 - core index']
  #allocation1 [shape = 'u32[72,128]{1,0:T(1,128)}', space=vmem, size = 0x9000, scoped, tag = 'internal scratch']
  %s0 = inlined_call_operand.hbm [shape: bf16[32,128], index: 0, kind: input, shape index: {}]
  %s1 = inlined_call_operand.hbm [shape: bf16[128,128], index: 1, kind: input, shape index: {}]
  %s2 = inlined_call_operand.vmem [shape: f32[1,128], index: 2, kind: input, shape index: {}]
  %s3 = inlined_call_operand.hbm [shape: f32[32,128], index: 3, kind: output, shape index: {}]
  %s4 = sld [smem:[#allocation0]]
  $region53: #{tpu_custom_call.1} parent=0
    _
  %s6 = ssub.s32 1, %s4
  %s7 = scalar_select 0, %s6, %s4
  $region1: #{tpu_custom_call.1} parent=0
    #allocation2 [shape = 'u8[8192]{0}', space=vmem, size = 0x2000, scoped, tag = 'input window, operand 0']
    #allocation3 [shape = 's32[2]{0}', space=sflag, size = 0x8, scoped, tag = 'scoped memory for tpu_custom_call.1']
    #allocation4 [shape = 's32[2]{0}', space=sflag, size = 0x8, scoped, tag = 'scoped memory for tpu_custom_call.1']
    #allocation5 [shape = 'u8[32768]{0}', space=vmem, size = 0x8000, scoped, tag = 'input window, operand 1, single buffered']
    #allocation6 [shape = 's32[1]{0}', space=sflag, size = 0x4, scoped, tag = 'scoped memory for tpu_custom_call.1']
    #allocation7 [shape = 'u8[16384]{0}', space=vmem, size = 0x4000, scoped, tag = 'output window, operand 0']
    %8 = vsyncpa [#allocation3], 0
    %s9 = scalar_lea.sflag [#allocation3], 1
    %10 = vsyncpa %s9, 0
    %11 = vsyncpa [#allocation6], 0
    %12 = vsyncpa [#allocation4], 0
    %s13 = scalar_lea.sflag [#allocation4], 1
    %14 = vsyncpa %s13, 0
    loop: start=0, step=1, limit=4
    $region2: #{tpu_custom_call.1} parent=1 // loop_pre_header
      _
    $region3: #{tpu_custom_call.1} parent=1 // loop_header
      %s16 = sphi 0, %s20
      %p17 = scmp.ge.s32.totalorder %s16, 4
      %s26 = sphi 0, %s28
      %s29 = sphi 0, %s26
      %s30 = sphi 0, %s29
      %s46 = sphi 0, %s30
      %s50 = sphi 0, %s50
      %s52 = sphi 0, %s50
      %s53 = sphi 0, %s52
      %s67 = sphi 0, %s53
      %s71 = sphi 0, %s71
      %s73 = sphi 0, %s71
      %s74 = sphi 0, %s73
      %s88 = sphi 0, %s74
      %s94 = sphi 0, %s96
      %s97 = sphi 0, %s94
      %s98 = sphi 0, %s97
      %s114 = sphi 0, %s98
    $region4: #{tpu_custom_call.1} parent=1 // loop_header_branch
      %19 = sbr.rel (%p17) target = $region8
    $region5: #{tpu_custom_call.1} parent=1 // loop_body
      %s21 = ssub.s32 %s16, 1
      %s22 = ssub.s32 %s16, 2
      %s23 = sadd.s32 %s16, 1
      %s24 = ssub.s32 %s16, %s23
      %p25 = scmp.eq.s32.totalorder %s24, 0
      %s27 = sadd.s32 %s26, 1
      %s28 = scalar_select %p25, %s26, %s27
      %p31 = pneg %p25
      %p32 = scmp.eq.s32.totalorder %s16, 1
      %p33 = por %p31, %p32
      %p34 = scmp.ne.s32.totalorder %s26, %s29
      %p35 = scmp.eq.s32.totalorder %s16, 0
      %p36 = por %p34, %p35
      %p37 = scmp.ne.s32.totalorder %s26, %s29
      %p38 = scmp.eq.s32.totalorder %s21, 1
      %p39 = por %p37, %p38
      %p40 = scmp.ne.s32.totalorder %s29, %s30
      %p41 = scmp.eq.s32.totalorder %s21, 0
      %p42 = por %p40, %p41
      %p43 = scmp.ne.s32.totalorder %s29, %s30
      %p44 = scmp.eq.s32.totalorder %s22, 1
      %p45 = por %p43, %p44
      %p47 = scmp.ne.s32.totalorder %s30, %s46
      %p48 = scmp.eq.s32.totalorder %s22, 0
      %p49 = por %p47, %p48
      %s51 = sadd.s32 %s50, 1
      %p54 = scmp.eq.s32.totalorder %s16, 1
      %p55 = scmp.ne.s32.totalorder %s50, %s52
      %p56 = scmp.eq.s32.totalorder %s16, 0
      %p57 = por %p55, %p56
      %p58 = scmp.ne.s32.totalorder %s50, %s52
      %p59 = scmp.eq.s32.totalorder %s21, 1
      %p60 = por %p58, %p59
      %p61 = scmp.ne.s32.totalorder %s52, %s53
      %p62 = scmp.eq.s32.totalorder %s21, 0
      %p63 = por %p61, %p62
      %p64 = scmp.ne.s32.totalorder %s52, %s53
      %p65 = scmp.eq.s32.totalorder %s22, 1
      %p66 = por %p64, %p65
      %p68 = scmp.ne.s32.totalorder %s53, %s67
      %p69 = scmp.eq.s32.totalorder %s22, 0
      %p70 = por %p68, %p69
      %s72 = sadd.s32 %s71, 1
      %p75 = scmp.eq.s32.totalorder %s16, 1
      %p76 = scmp.ne.s32.totalorder %s71, %s73
      %p77 = scmp.eq.s32.totalorder %s16, 0
      %p78 = por %p76, %p77
      %p79 = scmp.ne.s32.totalorder %s71, %s73
      %p80 = scmp.eq.s32.totalorder %s21, 1
      %p81 = por %p79, %p80
      %p82 = scmp.ne.s32.totalorder %s73, %s74
      %p83 = scmp.eq.s32.totalorder %s21, 0
      %p84 = por %p82, %p83
      %p85 = scmp.ne.s32.totalorder %s73, %s74
      %p86 = scmp.eq.s32.totalorder %s22, 1
      %p87 = por %p85, %p86
      %p89 = scmp.ne.s32.totalorder %s74, %s88
      %p90 = scmp.eq.s32.totalorder %s22, 0
      %p91 = por %p89, %p90
      %s92 = ssub.s32 %s16, %s23
      %p93 = scmp.eq.s32.totalorder %s92, 0
      %s95 = sadd.s32 %s94, 1
      %s96 = scalar_select %p93, %s94, %s95
      %p99 = pneg %p93
      %p100 = scmp.eq.s32.totalorder %s16, 1
      %p101 = por %p99, %p100
      %p102 = scmp.ne.s32.totalorder %s94, %s97
      %p103 = scmp.eq.s32.totalorder %s16, 0
      %p104 = por %p102, %p103
      %p105 = scmp.ne.s32.totalorder %s94, %s97
      %p106 = scmp.eq.s32.totalorder %s21, 1
      %p107 = por %p105, %p106
      %p108 = scmp.ne.s32.totalorder %s97, %s98
      %p109 = scmp.eq.s32.totalorder %s21, 0
      %p110 = por %p108, %p109
      %p111 = scmp.ne.s32.totalorder %s97, %s98
      %p112 = scmp.eq.s32.totalorder %s22, 1
      %p113 = por %p111, %p112
      %p115 = scmp.ne.s32.totalorder %s98, %s114
      %p116 = scmp.eq.s32.totalorder %s22, 0
      %p117 = por %p115, %p116
      %p118 = scmp.le.s32.totalorder 1, %s16
      %p119 = scmp.lt.s32.totalorder %s16, 3
      %p120 = pnand %p118, %p119
      %p121 = pneg %p120
      // Predicated region
      $region9: #{tpu_custom_call.1} parent=5 // pred_check
        _
      $region10: #{tpu_custom_call.1} parent=5 // pred_check_branch
        %123 = sbr.rel (%p120) target = $region12
      $region11: #{tpu_custom_call.1} parent=5 // pred_region
        %s124 = ssub.s32 %s16, 1
        // Predicated region
        $region13: #{tpu_custom_call.1} parent=11 // pred_check
          %p125 = pneg %p63
        $region14: #{tpu_custom_call.1} parent=11 // pred_check_branch
          %127 = sbr.rel (%p125) target = $region16
        $region15: #{tpu_custom_call.1} parent=11 // pred_region
          %129 = vsyncadd [#allocation6], 0
          %s130 = sshll.u32 %s1, 4
          %s131 = int_to_ptr.hbm [resolvable:$true] %s130
          %s132 = sshll.u32 [#allocation5], 4
          %s133 = int_to_ptr.vmem [resolvable:$true] %s132
          %138 = dma.hbm_to_vmem [thread:$0]  %s131, 1024, %s133, [#allocation6], 64, 64, 4
        $region16: #{tpu_custom_call.1} parent=11 // pred_fallthru
          _
        // Predicated region
        $region17: #{tpu_custom_call.1} parent=11 // pred_check
          %p139 = pneg %p84
        $region18: #{tpu_custom_call.1} parent=11 // pred_check_branch
          %141 = sbr.rel (%p139) target = $region20
        $region19: #{tpu_custom_call.1} parent=11 // pred_region
          _
        $region20: #{tpu_custom_call.1} parent=11 // pred_fallthru
          _
      $region12: #{tpu_custom_call.1} parent=5 // pred_fallthru
        _
      %p142 = scmp.lt.s32.totalorder %s16, 2
      // Predicated region
      $region21: #{tpu_custom_call.1} parent=5 // pred_check
        %p143 = pneg %p142
      $region22: #{tpu_custom_call.1} parent=5 // pred_check_branch
        %145 = sbr.rel (%p143) target = $region24
      $region23: #{tpu_custom_call.1} parent=5 // pred_region
        // Predicated region
        $region25: #{tpu_custom_call.1} parent=23 // pred_check
          %p146 = pneg %p36
        $region26: #{tpu_custom_call.1} parent=23 // pred_check_branch
          %148 = sbr.rel (%p146) target = $region28
        $region27: #{tpu_custom_call.1} parent=23 // pred_region
          %s149 = sand.u32 %s26, 1
          %s150 = scalar_lea.sflag [#allocation3], %s149
          %s151 = sand.u32 %s26, 1
          %s152 = smul.addr %s151, 8
          %s153 = scalar_lea.vmem [#allocation2], %s152
          %s154 = smul.u32 2, %s16
          %156 = vsyncadd %s150, 0
          %s157 = smul.addr %s154, 4
          %s158 = scalar_lea.hbm %s0, %s157
          %s159 = sshll.u32 %s158, 4
          %s160 = int_to_ptr.hbm [resolvable:$true] %s159
          %s161 = sshll.u32 %s153, 4
          %s162 = int_to_ptr.vmem [resolvable:$true] %s161
          %167 = dma.hbm_to_vmem [thread:$0]  %s160, 128, %s162, %s150, 64, 64, 4
        $region28: #{tpu_custom_call.1} parent=23 // pred_fallthru
          _
      $region24: #{tpu_custom_call.1} parent=5 // pred_fallthru
        _
      %p168 = scmp.le.s32.totalorder 1, %s16
      %p169 = scmp.lt.s32.totalorder %s16, 3
      %p170 = pnand %p168, %p169
      %p171 = pneg %p170
      // Predicated region
      $region29: #{tpu_custom_call.1} parent=5 // pred_check
        _
      $region30: #{tpu_custom_call.1} parent=5 // pred_check_branch
        %173 = sbr.rel (%p170) target = $region32
      $region31: #{tpu_custom_call.1} parent=5 // pred_region
        %s174 = ssub.s32 %s16, 1
        %s175 = sand.u32 %s29, 1
        %s176 = scalar_lea.sflag [#allocation3], %s175
        %s177 = sand.u32 %s29, 1
        %s178 = smul.addr %s177, 8
        %s179 = scalar_lea.vmem [#allocation2], %s178
        // Predicated region
        $region33: #{tpu_custom_call.1} parent=31 // pred_check
          %p180 = pneg %p42
        $region34: #{tpu_custom_call.1} parent=31 // pred_check_branch
          %182 = sbr.rel (%p180) target = $region36
        $region35: #{tpu_custom_call.1} parent=31 // pred_region
          %184 = dma.done %s176, 128
        $region36: #{tpu_custom_call.1} parent=31 // pred_fallthru
          _
        // Predicated region
        $region37: #{tpu_custom_call.1} parent=31 // pred_check
          %p185 = pneg %p63
        $region38: #{tpu_custom_call.1} parent=31 // pred_check_branch
          %187 = sbr.rel (%p185) target = $region40
        $region39: #{tpu_custom_call.1} parent=31 // pred_region
          %189 = dma.done [#allocation6], 1024
        $region40: #{tpu_custom_call.1} parent=31 // pred_fallthru
          _
        %s190 = sand.u32 %s29, 1
        %s191 = scalar_lea.sflag [#allocation3], %s190
        %s192 = sand.u32 %s29, 1
        %s193 = smul.addr %s192, 8
        %s194 = scalar_lea.vmem [#allocation2], %s193
        %p195 = pneg %p42
        %p196 = pneg %p39
        %p197 = pneg %p63
        %p198 = pneg %p60
        %p199 = pneg %p84
        %p200 = pneg %p81
        %p201 = pneg %p110
        %p202 = pneg %p107
        %s203 = sand.u32 %s97, 1
        %s204 = scalar_lea.sflag [#allocation4], %s203
        %s205 = sand.u32 %s97, 1
        %s206 = smul.addr %s205, 16
        %s207 = scalar_lea.vmem [#allocation7], %s206
        %s208 = smul.u32 2, %s21
        %s209 = smul.u32 2, %s21
        %v210 = vld [vmem:[%s179] sm:$0xf]
        %v211 = vld [vmem:[%s179 + $0x4] sm:$0xf]
        %v212 = vld [vmem:[#allocation5] sm:$0xf]
        %v213 = vld [vmem:[#allocation5 + $0x4] sm:$0xf]
        %v214 = vld [vmem:[#allocation5 + $0x8] sm:$0xf]
        %v215 = vld [vmem:[#allocation5 + $0xc] sm:$0xf]
        %v216 = vld [vmem:[#allocation5 + $0x10] sm:$0xf]
        %v217 = vld [vmem:[#allocation5 + $0x14] sm:$0xf]
        %v218 = vld [vmem:[#allocation5 + $0x18] sm:$0xf]
        %v219 = vld [vmem:[#allocation5 + $0x1c] sm:$0xf]
        %v220 = vld [vmem:[#allocation5 + $0x20] sm:$0xf]
        %v221 = vld [vmem:[#allocation5 + $0x24] sm:$0xf]
        %v222 = vld [vmem:[#allocation5 + $0x28] sm:$0xf]
        %v223 = vld [vmem:[#allocation5 + $0x2c] sm:$0xf]
        %v224 = vld [vmem:[#allocation5 + $0x30] sm:$0xf]
        %v225 = vld [vmem:[#allocation5 + $0x34] sm:$0xf]
        %v226 = vld [vmem:[#allocation5 + $0x38] sm:$0xf]
        %v227 = vld [vmem:[#allocation5 + $0x3c] sm:$0xf]
        %v228 = vld [vmem:[%s2] sm:$0x1]
        %v230 = vperm.slane %v228, 0
        %v234 = vunpack.c.l.b16 %v210
        %v235 = vunpack.c.l.b16 %v211
        %v236 = vpack.c.b16 %v235, %v234
        %v254 = vunpack.c.l.b16 %v212
        %v255 = vunpack.c.l.b16 %v213
        %v256 = vunpack.c.l.b16 %v214
        %v257 = vunpack.c.l.b16 %v215
        %v258 = vunpack.c.l.b16 %v216
        %v259 = vunpack.c.l.b16 %v217
        %v260 = vunpack.c.l.b16 %v218
        %v261 = vunpack.c.l.b16 %v219
        %v262 = vunpack.c.l.b16 %v220
        %v263 = vunpack.c.l.b16 %v221
        %v264 = vunpack.c.l.b16 %v222
        %v265 = vunpack.c.l.b16 %v223
        %v266 = vunpack.c.l.b16 %v224
        %v267 = vunpack.c.l.b16 %v225
        %v268 = vunpack.c.l.b16 %v226
        %v269 = vunpack.c.l.b16 %v227
        %v270 = vpack.c.b16 %v255, %v254
        %v271 = vpack.c.b16 %v257, %v256
        %v272 = vpack.c.b16 %v259, %v258
        %v273 = vpack.c.b16 %v261, %v260
        %v274 = vpack.c.b16 %v263, %v262
        %v275 = vpack.c.b16 %v265, %v264
        %v276 = vpack.c.b16 %v267, %v266
        %v277 = vpack.c.b16 %v269, %v268
        %286 = vmatpush.bf16.msra.mxu0 %v277
        %287 = vmatpush.bf16.msra.mxu0 %v276
        %288 = vmatpush.bf16.msra.mxu0 %v275
        %289 = vmatpush.bf16.msra.mxu0 %v274
        %290 = vmatpush.bf16.msra.mxu0 %v273
        %291 = vmatpush.bf16.msra.mxu0 %v272
        %292 = vmatpush.bf16.msra.mxu0 %v271
        %293 = vmatpush.bf16.msra.mxu0 %v270
        %294 = vmatmul.bf16.gmra.mxu0 %v236
        %v295 = vpop.f32.mrf.mxu0
        %v296 = vadd.f32 %v230, %v295
        %v297 = vpop.f32.mrf.mxu0
        %v298 = vadd.f32 %v230, %v297
        %299 = vdwg.mxu0
        %300 = vst [vmem:[%s207] sm:$0xff] %v296
        %301 = vst [vmem:[%s207 + $0x8] sm:$0xff] %v298
        %s302 = sand.u32 %s97, 1
        %s303 = scalar_lea.sflag [#allocation4], %s302
        %s304 = sand.u32 %s97, 1
        %s305 = smul.addr %s304, 16
        %s306 = scalar_lea.vmem [#allocation7], %s305
        // Predicated region
        $region41: #{tpu_custom_call.1} parent=31 // pred_check
          %p307 = pneg %p107
        $region42: #{tpu_custom_call.1} parent=31 // pred_check_branch
          %309 = sbr.rel (%p307) target = $region44
        $region43: #{tpu_custom_call.1} parent=31 // pred_region
          %s310 = smul.u32 2, %s21
          %312 = vsyncadd %s303, 0
          %s313 = smul.addr %s310, 8
          %s314 = scalar_lea.hbm %s3, %s313
          %s315 = sshll.u32 %s306, 4
          %s316 = int_to_ptr.vmem [resolvable:$true] %s315
          %s317 = sshll.u32 %s314, 4
          %s318 = int_to_ptr.hbm [resolvable:$true] %s317
          %323 = dma.vmem_to_hbm [thread:$0]  %s316, 256, %s318, %s303, 128, 128, 8
        $region44: #{tpu_custom_call.1} parent=31 // pred_fallthru
          _
      $region32: #{tpu_custom_call.1} parent=5 // pred_fallthru
        _
      %p324 = scmp.le.s32.totalorder 2, %s16
      // Predicated region
      $region45: #{tpu_custom_call.1} parent=5 // pred_check
        %p325 = pneg %p324
      $region46: #{tpu_custom_call.1} parent=5 // pred_check_branch
        %327 = sbr.rel (%p325) target = $region48
      $region47: #{tpu_custom_call.1} parent=5 // pred_region
        %s328 = ssub.s32 %s16, 2
        // Predicated region
        $region49: #{tpu_custom_call.1} parent=47 // pred_check
          %p329 = pneg %p113
        $region50: #{tpu_custom_call.1} parent=47 // pred_check_branch
          %331 = sbr.rel (%p329) target = $region52
        $region51: #{tpu_custom_call.1} parent=47 // pred_region
          %s332 = sand.u32 %s98, 1
          %s333 = scalar_lea.sflag [#allocation4], %s332
          %s334 = sand.u32 %s98, 1
          %s335 = smul.addr %s334, 16
          %s336 = scalar_lea.vmem [#allocation7], %s335
          %338 = dma.done %s333, 256
        $region52: #{tpu_custom_call.1} parent=47 // pred_fallthru
          _
      $region48: #{tpu_custom_call.1} parent=5 // pred_fallthru
        _
    $region6: #{tpu_custom_call.1} parent=1 // loop_footer
      %s20 = sadd.s32 1, %s16
    $region7: #{tpu_custom_call.1} parent=1 // loop_footer_branch
      %15 = sbr.rel target = $region3
    $region8: #{tpu_custom_call.1} parent=1 // loop_exit
      _
    %339 = vsyncpa [#allocation3], 1
    %s340 = scalar_lea.sflag [#allocation3], 1
    %341 = vsyncpa %s340, 1
    %342 = vsyncpa [#allocation6], 1
    %343 = vsyncpa [#allocation4], 1
    %s344 = scalar_lea.sflag [#allocation4], 1
    %345 = vsyncpa %s344, 1

</llo_original>
